<compile_context>
chip_gen: v7x
topology: tpu7x:2x2x1
jax: 0.10.0
libtpu: 0.0.40
codegen_flags: <defaults>
</compile_context>

<pallas_src>
import jax
import jax.numpy as jnp
from jax.experimental import pallas as pl
from jax.experimental.pallas import tpu as pltpu


LAYER_NORM_EPS = 1e-12  # BERT default


def _bert_self_output_kernel(h_ref, x_ref, wt_ref, b_ref, g_ref, beta_ref, o_ref):
    # h_ref, x_ref : (block_m, H) in the activation / residual dtypes
    # wt_ref       : (H, H) = weight.T, i.e. (in_features, out_features),
    #                already cast to the matmul dtype in the wrapper
    # b_ref, g_ref, beta_ref : (1, H) float32
    #
    # Canonical (M,K)x(K,N) product -> clean MXU path, f32 accumulation.
    y = jnp.dot(h_ref[...], wt_ref[...], preferred_element_type=jnp.float32)

    # Dropout: identity in eval/inference mode.
    # TODO(synk): training-mode dropout would need pltpu.prng_seed/prng_random_bits.

    # Residual add + LayerNorm over the hidden axis, all in float32.
    z = y + b_ref[...] + x_ref[...].astype(jnp.float32)

    # Single-pass moments: var = E[z^2] - mean^2 (clamped at 0 for safety on
    # near-constant / garbage ragged rows).  Saves one full (block_m, H) pass.
    mean = jnp.mean(z, axis=-1, keepdims=True)
    mean_sq = jnp.mean(z * z, axis=-1, keepdims=True)
    var = jnp.maximum(mean_sq - mean * mean, 0.0)
    inv = jax.lax.rsqrt(var + LAYER_NORM_EPS)
    o_ref[...] = ((z - mean) * inv * g_ref[...] + beta_ref[...]).astype(o_ref.dtype)


def _round_up(x, m):
    return ((x + m - 1) // m) * m


def _cdiv(a, b):
    return -(-a // b)


def bert_self_output(hidden_states, input_tensor, weight, bias, gamma, beta,
                     *, block_m=512, matmul_in_bf16=False):
    """BertSelfOutput forward (eval-mode dropout).

    hidden_states, input_tensor: (B, S, H)
    weight: (H, H), PyTorch nn.Linear layout (out_features, in_features)
    bias, gamma, beta: (H,)
    matmul_in_bf16: optionally run the dense matmul in bf16 (f32 accumulation,
      f32 LayerNorm) when activations are f32 -- changes numerics, off by default.
    """
    B, S, H = hidden_states.shape
    M = B * S
    out_dtype = hidden_states.dtype

    h2 = hidden_states.reshape(M, H)
    x2 = input_tensor.reshape(M, H)
    if matmul_in_bf16 and h2.dtype == jnp.float32:
        h2 = h2.astype(jnp.bfloat16)  # residual x2 stays f32; LN math stays f32

    # Transpose the (out,in) weight ONCE here (HBM-side) and match the matmul
    # operand dtype so bf16 activations stay on the native bf16 MXU path.
    w_t = weight.T.astype(h2.dtype)

    # Small per-channel vectors: cast to f32 once here (not per grid step).
    b2 = bias.reshape(1, H).astype(jnp.float32)
    g2 = gamma.reshape(1, H).astype(jnp.float32)
    be2 = beta.reshape(1, H).astype(jnp.float32)

    # Row tile: large (MXU / pipeline friendly), sublane-multiple, never bigger
    # than needed.  No padding: Pallas handles the ragged final block.
    block_m = max(8, min(block_m, _round_up(M, 8)))
    block_m = _round_up(block_m, 8)
    # v7x megacore: guarantee >= 2 grid steps so both TensorCores get work.
    if M >= 16:
        block_m = min(block_m, _round_up(_cdiv(M, 2), 8))
    grid_steps = _cdiv(M, block_m)

    # Deeper activation buffering only pays off with enough grid steps.
    buf_act = 3 if grid_steps >= 3 else 2

    act_bytes = h2.dtype.itemsize
    x_bytes = x2.dtype.itemsize
    out_bytes = jnp.dtype(out_dtype).itemsize
    w_bytes = w_t.dtype.itemsize

    # Working-set estimate: pipelined activation tiles + output double buffer +
    # resident weight (budget 2 copies in case Buffered(1) is not honored) +
    # per-channel vectors + f32 matmul/LN temporaries.
    est_vmem = (buf_act * block_m * H * (act_bytes + x_bytes)
                + 2 * block_m * H * out_bytes
                + 2 * H * H * w_bytes
                + 6 * H * 4
                + 4 * block_m * H * 4)
    try:
        phys_vmem = pltpu.get_tpu_info().vmem_capacity_bytes
    except Exception:
        phys_vmem = 64 << 20  # conservative: v7x per-TensorCore VMEM
    # ~102 MiB cap on v5e/v6e (128 MiB physical), ~51 MiB on v7x (64 MiB).
    cap = max(int(phys_vmem * 0.8), 32 << 20)
    vmem_limit = min(int(est_vmem * 1.25) + (4 << 20), cap)

    cost = pl.CostEstimate(
        flops=2 * M * H * H,
        transcendentals=M,  # one rsqrt per row
        bytes_accessed=(M * H * (act_bytes + x_bytes + out_bytes)
                        + H * H * w_bytes + 3 * H * 4),
    )

    def _call(use_pipeline_mode):
        buffered_cls = getattr(pl, "Buffered", None) if use_pipeline_mode else None

        def spec(shape, index_map, buffers=None):
            if buffered_cls is not None and buffers is not None and buffers != 2:
                return pl.BlockSpec(shape, index_map,
                                    pipeline_mode=buffered_cls(buffers))
            return pl.BlockSpec(shape, index_map)

        in_specs = [
            spec((block_m, H), lambda i: (i, 0), buffers=buf_act),  # hidden rows
            spec((block_m, H), lambda i: (i, 0), buffers=buf_act),  # residual rows
            spec((H, H), lambda i: (0, 0), buffers=1),  # weight.T: resident, DMA'd once
            spec((1, H), lambda i: (0, 0)),             # bias  (f32)
            spec((1, H), lambda i: (0, 0)),             # gamma (f32)
            spec((1, H), lambda i: (0, 0)),             # beta  (f32)
        ]
        out_spec = spec((block_m, H), lambda i: (i, 0))

        return pl.pallas_call(
            _bert_self_output_kernel,
            out_shape=jax.ShapeDtypeStruct((M, H), out_dtype),
            grid_spec=pltpu.PrefetchScalarGridSpec(
                num_scalar_prefetch=0,
                grid=(grid_steps,),
                in_specs=in_specs,
                out_specs=out_spec,
            ),
            compiler_params=pltpu.CompilerParams(
                dimension_semantics=("parallel",),
                vmem_limit_bytes=vmem_limit,
            ),
            cost_estimate=cost,
        )(h2, x2, w_t, b2, g2, be2)

    try:
        out2d = _call(True)
    except Exception:
        # This jax build rejected pipeline_mode / Buffered for pallas_call
        # specs -> fall back to the default double-buffered pipeline.
        out2d = _call(False)

    return out2d.reshape(B, S, H)


def _reference(hidden_states, input_tensor, weight, bias, gamma, beta):
    h = hidden_states.astype(jnp.float32)
    x = input_tensor.astype(jnp.float32)
    y = jnp.einsum("bsh,oh->bso", h, weight.astype(jnp.float32)) + bias
    z = y + x
    mean = jnp.mean(z, axis=-1, keepdims=True)
    var = jnp.mean((z - mean) ** 2, axis=-1, keepdims=True)
    return (z - mean) * jax.lax.rsqrt(var + LAYER_NORM_EPS) * gamma + beta


if __name__ == "__main__":
    key = jax.random.PRNGKey(0)
    # Small but lane-exercising shape: H=128 hits the real 128-lane path.
    B, S, H = 2, 12, 128

    k1, k2, k3, k4 = jax.random.split(key, 4)
    hidden_states = jax.random.normal(k1, (B, S, H), dtype=jnp.float32)
    input_tensor = jax.random.normal(k2, (B, S, H), dtype=jnp.float32)

    # Deterministic parameter init (nn.Linear-style uniform, LN = ones/zeros).
    bound = 1.0 / (H ** 0.5)
    weight = jax.random.uniform(k3, (H, H), minval=-bound, maxval=bound,
                                dtype=jnp.float32)  # (out_features, in_features)
    bias = jax.random.uniform(k4, (H,), minval=-bound, maxval=bound,
                              dtype=jnp.float32)
    gamma = jnp.ones((H,), dtype=jnp.float32)
    beta = jnp.zeros((H,), dtype=jnp.float32)

    ref = _reference(hidden_states, input_tensor, weight, bias, gamma, beta)

    # 1) Default path: M=24 -> block_m clamps to 16, grid=(2,) with a ragged
    #    final block (exercises the no-pad / masked-writeback path and the
    #    two-TensorCore split on v7x).
    out = jax.block_until_ready(
        bert_self_output(hidden_states, input_tensor, weight, bias, gamma, beta))
    assert out.shape == (B, S, H)
    assert jnp.allclose(out, ref, atol=1e-4, rtol=1e-4), "mismatch (default)"

    # 2) block_m=8 -> grid=(3,): exercises the multi-step / deep-buffer path.
    out2 = jax.block_until_ready(
        bert_self_output(hidden_states, input_tensor, weight, bias, gamma, beta,
                         block_m=8))
    assert jnp.allclose(out2, ref, atol=1e-4, rtol=1e-4), "mismatch (block_m=8)"

    # 3) bf16 activations/weight: native bf16 MXU path with f32 accumulation
    #    and f32 LayerNorm.
    out3 = jax.block_until_ready(
        bert_self_output(hidden_states.astype(jnp.bfloat16),
                         input_tensor.astype(jnp.bfloat16),
                         weight.astype(jnp.bfloat16),
                         bias, gamma, beta))
    ref3 = _reference(hidden_states.astype(jnp.bfloat16),
                      input_tensor.astype(jnp.bfloat16),
                      weight.astype(jnp.bfloat16), bias, gamma, beta)
    assert jnp.allclose(out3.astype(jnp.float32), ref3, atol=1e-1, rtol=1e-1), \
        "mismatch (bf16 path)"

    print("KERNEL_OK")
</pallas_src>

<mosaic_0001>
module attributes {stable_mosaic.version = 11 : i64} {
  func.func @_bert_self_output_kernel(%arg0: i32, %arg1: memref<16x128xf32, #tpu.memory_space<vmem>>, %arg2: memref<16x128xf32, #tpu.memory_space<vmem>>, %arg3: memref<128x128xf32, #tpu.memory_space<vmem>>, %arg4: memref<1x128xf32, #tpu.memory_space<vmem>>, %arg5: memref<1x128xf32, #tpu.memory_space<vmem>>, %arg6: memref<1x128xf32, #tpu.memory_space<vmem>>, %arg7: memref<16x128xf32, #tpu.memory_space<vmem>>) attributes {dimension_semantics = [#tpu.dimension_semantics<parallel>], iteration_bounds = array<i64: 2>, scalar_prefetch = 0 : i64, scratch_operands = 0 : i64, tpu.core_type = #tpu.core_type<tc>, window_params = [{transform_indices = @transform_0, window_bounds = array<i64: 16, 128>}, {transform_indices = @transform_1, window_bounds = array<i64: 16, 128>}, {pipeline_mode = #tpu.pipeline_mode<synchronous>, transform_indices = @transform_2, window_bounds = array<i64: 128, 128>}, {pipeline_mode = #tpu.pipeline_mode<synchronous>, transform_indices = @transform_3, window_bounds = array<i64: 1, 128>}, {pipeline_mode = #tpu.pipeline_mode<synchronous>, transform_indices = @transform_4, window_bounds = array<i64: 1, 128>}, {pipeline_mode = #tpu.pipeline_mode<synchronous>, transform_indices = @transform_5, window_bounds = array<i64: 1, 128>}, {transform_indices = @transform_6, window_bounds = array<i64: 16, 128>}]} {
    %c0 = arith.constant 0 : index
    %c0_0 = arith.constant 0 : index
    %0 = vector.load %arg1[%c0, %c0_0] : memref<16x128xf32, #tpu.memory_space<vmem>>, vector<16x128xf32>
    %c0_1 = arith.constant 0 : index
    %c0_2 = arith.constant 0 : index
    %1 = vector.load %arg3[%c0_1, %c0_2] : memref<128x128xf32, #tpu.memory_space<vmem>>, vector<128x128xf32>
    %cst = arith.constant dense<0.000000e+00> : vector<16x128xf32>
    %2 = tpu.matmul %0, %1, %cst {dimension_numbers = #tpu.dot_dimension_numbers<[1], [0], [0], [1], [0, 0, 1, 1], [], []>} : vector<16x128xf32>, vector<128x128xf32>, vector<16x128xf32> -> vector<16x128xf32>
    %c0_3 = arith.constant 0 : index
    %c0_4 = arith.constant 0 : index
    %3 = vector.load %arg4[%c0_3, %c0_4] : memref<1x128xf32, #tpu.memory_space<vmem>>, vector<1x128xf32>
    %4 = vector.broadcast %3 : vector<1x128xf32> to vector<16x128xf32>
    %5 = arith.addf %2, %4 : vector<16x128xf32>
    %c0_5 = arith.constant 0 : index
    %c0_6 = arith.constant 0 : index
    %6 = vector.load %arg2[%c0_5, %c0_6] : memref<16x128xf32, #tpu.memory_space<vmem>>, vector<16x128xf32>
    %7 = arith.addf %5, %6 : vector<16x128xf32>
    %cst_7 = arith.constant dense<0.000000e+00> : vector<16xf32>
    %8 = vector.multi_reduction <add>, %7, %cst_7 [1] : vector<16x128xf32> to vector<16xf32>
    %9 = vector.shape_cast %8 : vector<16xf32> to vector<16x1xf32>
    %cst_8 = arith.constant 1.280000e+02 : f32
    %10 = vector.broadcast %cst_8 : f32 to vector<16x1xf32>
    %11 = arith.divf %9, %10 : vector<16x1xf32>
    %12 = arith.mulf %7, %7 : vector<16x128xf32>
    %cst_9 = arith.constant dense<0.000000e+00> : vector<16xf32>
    %13 = vector.multi_reduction <add>, %12, %cst_9 [1] : vector<16x128xf32> to vector<16xf32>
    %14 = vector.shape_cast %13 : vector<16xf32> to vector<16x1xf32>
    %cst_10 = arith.constant 1.280000e+02 : f32
    %15 = vector.broadcast %cst_10 : f32 to vector<16x1xf32>
    %16 = arith.divf %14, %15 : vector<16x1xf32>
    %17 = arith.mulf %11, %11 : vector<16x1xf32>
    %18 = arith.subf %16, %17 : vector<16x1xf32>
    %cst_11 = arith.constant 0.000000e+00 : f32
    %19 = vector.broadcast %cst_11 : f32 to vector<16x1xf32>
    %20 = arith.maximumf %18, %19 : vector<16x1xf32>
    %cst_12 = arith.constant 9.99999996E-13 : f32
    %21 = vector.broadcast %cst_12 : f32 to vector<16x1xf32>
    %22 = arith.addf %20, %21 : vector<16x1xf32>
    %23 = math.rsqrt %22 : vector<16x1xf32>
    %24 = vector.broadcast %11 : vector<16x1xf32> to vector<16x128xf32>
    %25 = arith.subf %7, %24 : vector<16x128xf32>
    %26 = vector.broadcast %23 : vector<16x1xf32> to vector<16x128xf32>
    %27 = arith.mulf %25, %26 : vector<16x128xf32>
    %c0_13 = arith.constant 0 : index
    %c0_14 = arith.constant 0 : index
    %28 = vector.load %arg5[%c0_13, %c0_14] : memref<1x128xf32, #tpu.memory_space<vmem>>, vector<1x128xf32>
    %29 = vector.broadcast %28 : vector<1x128xf32> to vector<16x128xf32>
    %30 = arith.mulf %27, %29 : vector<16x128xf32>
    %c0_15 = arith.constant 0 : index
    %c0_16 = arith.constant 0 : index
    %31 = vector.load %arg6[%c0_15, %c0_16] : memref<1x128xf32, #tpu.memory_space<vmem>>, vector<1x128xf32>
    %32 = vector.broadcast %31 : vector<1x128xf32> to vector<16x128xf32>
    %33 = arith.addf %30, %32 : vector<16x128xf32>
    %c0_17 = arith.constant 0 : index
    %c0_18 = arith.constant 0 : index
    %34 = vector.load %arg7[%c0_17, %c0_18] : memref<16x128xf32, #tpu.memory_space<vmem>>, vector<16x128xf32>
    tpu.vector_store %arg7[%c0_17, %c0_18], %33 {strides = array<i32>} : memref<16x128xf32, #tpu.memory_space<vmem>>, vector<16x128xf32>,
    return
  }
  func.func @transform_0(%arg0: i32) -> (i32, i32) {
    %c0_i32 = arith.constant 0 : i32
    %c0_i32_0 = arith.constant 0 : i32
    return %arg0, %c0_i32 : i32, i32
  }
  func.func @transform_1(%arg0: i32) -> (i32, i32) {
    %c0_i32 = arith.constant 0 : i32
    %c0_i32_0 = arith.constant 0 : i32
    return %arg0, %c0_i32 : i32, i32
  }
  func.func @transform_2(%arg0: i32) -> (i32, i32) {
    %c0_i32 = arith.constant 0 : i32
    %c0_i32_0 = arith.constant 0 : i32
    %c0_i32_1 = arith.constant 0 : i32
    return %c0_i32, %c0_i32_0 : i32, i32
  }
  func.func @transform_3(%arg0: i32) -> (i32, i32) {
    %c0_i32 = arith.constant 0 : i32
    %c0_i32_0 = arith.constant 0 : i32
    %c0_i32_1 = arith.constant 0 : i32
    return %c0_i32, %c0_i32_0 : i32, i32
  }
  func.func @transform_4(%arg0: i32) -> (i32, i32) {
    %c0_i32 = arith.constant 0 : i32
    %c0_i32_0 = arith.constant 0 : i32
    %c0_i32_1 = arith.constant 0 : i32
    return %c0_i32, %c0_i32_0 : i32, i32
  }
  func.func @transform_5(%arg0: i32) -> (i32, i32) {
    %c0_i32 = arith.constant 0 : i32
    %c0_i32_0 = arith.constant 0 : i32
    %c0_i32_1 = arith.constant 0 : i32
    return %c0_i32, %c0_i32_0 : i32, i32
  }
  func.func @transform_6(%arg0: i32) -> (i32, i32) {
    %c0_i32 = arith.constant 0 : i32
    %c0_i32_0 = arith.constant 0 : i32
    return %arg0, %c0_i32 : i32, i32
  }
}

module attributes {stable_mosaic.version = 11 : i64} {
  func.func @_bert_self_output_kernel(%arg0: i32, %arg1: memref<16x128xf32, #tpu.memory_space<vmem>>, %arg2: memref<16x128xf32, #tpu.memory_space<vmem>>, %arg3: memref<128x128xf32, #tpu.memory_space<vmem>>, %arg4: memref<1x128xf32, #tpu.memory_space<vmem>>, %arg5: memref<1x128xf32, #tpu.memory_space<vmem>>, %arg6: memref<1x128xf32, #tpu.memory_space<vmem>>, %arg7: memref<16x128xf32, #tpu.memory_space<vmem>>) attributes {dimension_semantics = [#tpu.dimension_semantics<parallel>], iteration_bounds = array<i64: 2>, scalar_prefetch = 0 : i64, scratch_operands = 0 : i64, tpu.core_type = #tpu.core_type<tc>, window_params = [{transform_indices = @transform_0, window_bounds = array<i64: 16, 128>}, {transform_indices = @transform_1, window_bounds = array<i64: 16, 128>}, {pipeline_mode = #tpu.pipeline_mode<synchronous>, transform_indices = @transform_2, window_bounds = array<i64: 128, 128>}, {pipeline_mode = #tpu.pipeline_mode<synchronous>, transform_indices = @transform_3, window_bounds = array<i64: 1, 128>}, {pipeline_mode = #tpu.pipeline_mode<synchronous>, transform_indices = @transform_4, window_bounds = array<i64: 1, 128>}, {pipeline_mode = #tpu.pipeline_mode<synchronous>, transform_indices = @transform_5, window_bounds = array<i64: 1, 128>}, {transform_indices = @transform_6, window_bounds = array<i64: 16, 128>}]} {
    %c0 = arith.constant 0 : index
    %c0_0 = arith.constant 0 : index
    %0 = vector.load %arg1[%c0, %c0_0] : memref<16x128xf32, #tpu.memory_space<vmem>>, vector<16x128xf32>
    %c0_1 = arith.constant 0 : index
    %c0_2 = arith.constant 0 : index
    %1 = vector.load %arg3[%c0_1, %c0_2] : memref<128x128xf32, #tpu.memory_space<vmem>>, vector<128x128xf32>
    %cst = arith.constant dense<0.000000e+00> : vector<16x128xf32>
    %2 = tpu.matmul %0, %1, %cst {dimension_numbers = #tpu.dot_dimension_numbers<[1], [0], [0], [1], [0, 0, 1, 1], [], []>} : vector<16x128xf32>, vector<128x128xf32>, vector<16x128xf32> -> vector<16x128xf32>
    %c0_3 = arith.constant 0 : index
    %c0_4 = arith.constant 0 : index
    %3 = vector.load %arg4[%c0_3, %c0_4] : memref<1x128xf32, #tpu.memory_space<vmem>>, vector<1x128xf32>
    %4 = vector.broadcast %3 : vector<1x128xf32> to vector<16x128xf32>
    %5 = arith.addf %2, %4 : vector<16x128xf32>
    %c0_5 = arith.constant 0 : index
    %c0_6 = arith.constant 0 : index
    %6 = vector.load %arg2[%c0_5, %c0_6] : memref<16x128xf32, #tpu.memory_space<vmem>>, vector<16x128xf32>
    %7 = arith.addf %5, %6 : vector<16x128xf32>
    %cst_7 = arith.constant dense<0.000000e+00> : vector<16xf32>
    %8 = vector.multi_reduction <add>, %7, %cst_7 [1] : vector<16x128xf32> to vector<16xf32>
    %9 = vector.shape_cast %8 : vector<16xf32> to vector<16x1xf32>
    %cst_8 = arith.constant 1.280000e+02 : f32
    %10 = vector.broadcast %cst_8 : f32 to vector<16x1xf32>
    %11 = arith.divf %9, %10 : vector<16x1xf32>
    %12 = arith.mulf %7, %7 : vector<16x128xf32>
    %cst_9 = arith.constant dense<0.000000e+00> : vector<16xf32>
    %13 = vector.multi_reduction <add>, %12, %cst_9 [1] : vector<16x128xf32> to vector<16xf32>
    %14 = vector.shape_cast %13 : vector<16xf32> to vector<16x1xf32>
    %cst_10 = arith.constant 1.280000e+02 : f32
    %15 = vector.broadcast %cst_10 : f32 to vector<16x1xf32>
    %16 = arith.divf %14, %15 : vector<16x1xf32>
    %17 = arith.mulf %11, %11 : vector<16x1xf32>
    %18 = arith.subf %16, %17 : vector<16x1xf32>
    %cst_11 = arith.constant 0.000000e+00 : f32
    %19 = vector.broadcast %cst_11 : f32 to vector<16x1xf32>
    %20 = arith.maximumf %18, %19 : vector<16x1xf32>
    %cst_12 = arith.constant 9.99999996E-13 : f32
    %21 = vector.broadcast %cst_12 : f32 to vector<16x1xf32>
    %22 = arith.addf %20, %21 : vector<16x1xf32>
    %23 = math.rsqrt %22 : vector<16x1xf32>
    %24 = vector.broadcast %11 : vector<16x1xf32> to vector<16x128xf32>
    %25 = arith.subf %7, %24 : vector<16x128xf32>
    %26 = vector.broadcast %23 : vector<16x1xf32> to vector<16x128xf32>
    %27 = arith.mulf %25, %26 : vector<16x128xf32>
    %c0_13 = arith.constant 0 : index
    %c0_14 = arith.constant 0 : index
    %28 = vector.load %arg5[%c0_13, %c0_14] : memref<1x128xf32, #tpu.memory_space<vmem>>, vector<1x128xf32>
    %29 = vector.broadcast %28 : vector<1x128xf32> to vector<16x128xf32>
    %30 = arith.mulf %27, %29 : vector<16x128xf32>
    %c0_15 = arith.constant 0 : index
    %c0_16 = arith.constant 0 : index
    %31 = vector.load %arg6[%c0_15, %c0_16] : memref<1x128xf32, #tpu.memory_space<vmem>>, vector<1x128xf32>
    %32 = vector.broadcast %31 : vector<1x128xf32> to vector<16x128xf32>
    %33 = arith.addf %30, %32 : vector<16x128xf32>
    %c0_17 = arith.constant 0 : index
    %c0_18 = arith.constant 0 : index
    %34 = vector.load %arg7[%c0_17, %c0_18] : memref<16x128xf32, #tpu.memory_space<vmem>>, vector<16x128xf32>
    tpu.vector_store %arg7[%c0_17, %c0_18], %33 {strides = array<i32>} : memref<16x128xf32, #tpu.memory_space<vmem>>, vector<16x128xf32>,
    return
  }
  func.func @transform_0(%arg0: i32) -> (i32, i32) {
    %c0_i32 = arith.constant 0 : i32
    %c0_i32_0 = arith.constant 0 : i32
    return %arg0, %c0_i32 : i32, i32
  }
  func.func @transform_1(%arg0: i32) -> (i32, i32) {
    %c0_i32 = arith.constant 0 : i32
    %c0_i32_0 = arith.constant 0 : i32
    return %arg0, %c0_i32 : i32, i32
  }
  func.func @transform_2(%arg0: i32) -> (i32, i32) {
    %c0_i32 = arith.constant 0 : i32
    %c0_i32_0 = arith.constant 0 : i32
    %c0_i32_1 = arith.constant 0 : i32
    return %c0_i32, %c0_i32_0 : i32, i32
  }
  func.func @transform_3(%arg0: i32) -> (i32, i32) {
    %c0_i32 = arith.constant 0 : i32
    %c0_i32_0 = arith.constant 0 : i32
    %c0_i32_1 = arith.constant 0 : i32
    return %c0_i32, %c0_i32_0 : i32, i32
  }
  func.func @transform_4(%arg0: i32) -> (i32, i32) {
    %c0_i32 = arith.constant 0 : i32
    %c0_i32_0 = arith.constant 0 : i32
    %c0_i32_1 = arith.constant 0 : i32
    return %c0_i32, %c0_i32_0 : i32, i32
  }
  func.func @transform_5(%arg0: i32) -> (i32, i32) {
    %c0_i32 = arith.constant 0 : i32
    %c0_i32_0 = arith.constant 0 : i32
    %c0_i32_1 = arith.constant 0 : i32
    return %c0_i32, %c0_i32_0 : i32, i32
  }
  func.func @transform_6(%arg0: i32) -> (i32, i32) {
    %c0_i32 = arith.constant 0 : i32
    %c0_i32_0 = arith.constant 0 : i32
    return %arg0, %c0_i32 : i32, i32
  }
}

</mosaic_0001>

<llo_original>
// kernel: tpu_custom_call.1
$region0: #{tpu_custom_call.1}
  #allocation0 [shape = 'u32[]', space=smem, size = 0x4, offset = 0x4, fixed_abs, tag = 'smem constant byte address 0x4 - core index']
  #allocation1 [shape = 'u32[144,128]{1,0:T(1,128)}', space=vmem, size = 0x12000, scoped, tag = 'internal scratch']
  %s0 = inlined_call_operand.hbm [shape: f32[24,128], index: 0, kind: input, shape index: {}]
  %s1 = inlined_call_operand.hbm [shape: f32[24,128], index: 1, kind: input, shape index: {}]
  %s2 = inlined_call_operand.hbm [shape: f32[128,128], index: 2, kind: input, shape index: {}]
  %s3 = inlined_call_operand.vmem [shape: f32[1,128], index: 3, kind: input, shape index: {}]
  %s4 = inlined_call_operand.vmem [shape: f32[1,128], index: 4, kind: input, shape index: {}]
  %s5 = inlined_call_operand.vmem [shape: f32[1,128], index: 5, kind: input, shape index: {}]
  %s6 = inlined_call_operand.hbm [shape: f32[24,128], index: 6, kind: output, shape index: {}]
  %s7 = sld [smem:[#allocation0]]
  $region69: #{tpu_custom_call.1} parent=0
    _
  %s9 = ssub.s32 1, %s7
  %s10 = scalar_select 0, %s9, %s7
  $region1: #{tpu_custom_call.1} parent=0
    #allocation2 [shape = 'u8[16384]{0}', space=vmem, size = 0x4000, scoped, tag = 'input window, operand 0']
    #allocation3 [shape = 's32[2]{0}', space=sflag, size = 0x8, scoped, tag = 'scoped memory for tpu_custom_call.1']
    #allocation4 [shape = 's32[2]{0}', space=sflag, size = 0x8, scoped, tag = 'scoped memory for tpu_custom_call.1']
    #allocation5 [shape = 'u8[16384]{0}', space=vmem, size = 0x4000, scoped, tag = 'input window, operand 1']
    #allocation6 [shape = 's32[2]{0}', space=sflag, size = 0x8, scoped, tag = 'scoped memory for tpu_custom_call.1']
    #allocation7 [shape = 'u8[65536]{0}', space=vmem, size = 0x10000, scoped, tag = 'input window, operand 2, single buffered']
    #allocation8 [shape = 'u8[16384]{0}', space=vmem, size = 0x4000, scoped, tag = 'output window, operand 0']
    %11 = vsyncpa [#allocation3], 0
    %s12 = scalar_lea.sflag [#allocation3], 1
    %13 = vsyncpa %s12, 0
    %14 = vsyncpa [#allocation6], 0
    %s15 = scalar_lea.sflag [#allocation6], 1
    %16 = vsyncpa %s15, 0
    %17 = vsyncpa [#allocation4], 0
    %s18 = scalar_lea.sflag [#allocation4], 1
    %19 = vsyncpa %s18, 0
    loop: start=0, step=1, limit=4
    $region2: #{tpu_custom_call.1} parent=1 // loop_pre_header
      _
    $region3: #{tpu_custom_call.1} parent=1 // loop_header
      %s21 = sphi 0, %s25
      %p22 = scmp.ge.s32.totalorder %s21, 4
      %s31 = sphi 0, %s33
      %s34 = sphi 0, %s31
      %s35 = sphi 0, %s34
      %s51 = sphi 0, %s35
      %s57 = sphi 0, %s59
      %s60 = sphi 0, %s57
      %s61 = sphi 0, %s60
      %s77 = sphi 0, %s61
      %s81 = sphi 0, %s81
      %s83 = sphi 0, %s81
      %s84 = sphi 0, %s83
      %s98 = sphi 0, %s84
      %s102 = sphi 0, %s102
      %s104 = sphi 0, %s102
      %s105 = sphi 0, %s104
      %s119 = sphi 0, %s105
      %s123 = sphi 0, %s123
      %s125 = sphi 0, %s123
      %s126 = sphi 0, %s125
      %s140 = sphi 0, %s126
      %s144 = sphi 0, %s144
      %s146 = sphi 0, %s144
      %s147 = sphi 0, %s146
      %s161 = sphi 0, %s147
      %s167 = sphi 0, %s169
      %s170 = sphi 0, %s167
      %s171 = sphi 0, %s170
      %s187 = sphi 0, %s171
    $region4: #{tpu_custom_call.1} parent=1 // loop_header_branch
      %24 = sbr.rel (%p22) target = $region8
    $region5: #{tpu_custom_call.1} parent=1 // loop_body
      %s26 = ssub.s32 %s21, 1
      %s27 = ssub.s32 %s21, 2
      %s28 = sadd.s32 %s21, 1
      %s29 = ssub.s32 %s21, %s28
      %p30 = scmp.eq.s32.totalorder %s29, 0
      %s32 = sadd.s32 %s31, 1
      %s33 = scalar_select %p30, %s31, %s32
      %p36 = pneg %p30
      %p37 = scmp.eq.s32.totalorder %s21, 1
      %p38 = por %p36, %p37
      %p39 = scmp.ne.s32.totalorder %s31, %s34
      %p40 = scmp.eq.s32.totalorder %s21, 0
      %p41 = por %p39, %p40
      %p42 = scmp.ne.s32.totalorder %s31, %s34
      %p43 = scmp.eq.s32.totalorder %s26, 1
      %p44 = por %p42, %p43
      %p45 = scmp.ne.s32.totalorder %s34, %s35
      %p46 = scmp.eq.s32.totalorder %s26, 0
      %p47 = por %p45, %p46
      %p48 = scmp.ne.s32.totalorder %s34, %s35
      %p49 = scmp.eq.s32.totalorder %s27, 1
      %p50 = por %p48, %p49
      %p52 = scmp.ne.s32.totalorder %s35, %s51
      %p53 = scmp.eq.s32.totalorder %s27, 0
      %p54 = por %p52, %p53
      %s55 = ssub.s32 %s21, %s28
      %p56 = scmp.eq.s32.totalorder %s55, 0
      %s58 = sadd.s32 %s57, 1
      %s59 = scalar_select %p56, %s57, %s58
      %p62 = pneg %p56
      %p63 = scmp.eq.s32.totalorder %s21, 1
      %p64 = por %p62, %p63
      %p65 = scmp.ne.s32.totalorder %s57, %s60
      %p66 = scmp.eq.s32.totalorder %s21, 0
      %p67 = por %p65, %p66
      %p68 = scmp.ne.s32.totalorder %s57, %s60
      %p69 = scmp.eq.s32.totalorder %s26, 1
      %p70 = por %p68, %p69
      %p71 = scmp.ne.s32.totalorder %s60, %s61
      %p72 = scmp.eq.s32.totalorder %s26, 0
      %p73 = por %p71, %p72
      %p74 = scmp.ne.s32.totalorder %s60, %s61
      %p75 = scmp.eq.s32.totalorder %s27, 1
      %p76 = por %p74, %p75
      %p78 = scmp.ne.s32.totalorder %s61, %s77
      %p79 = scmp.eq.s32.totalorder %s27, 0
      %p80 = por %p78, %p79
      %s82 = sadd.s32 %s81, 1
      %p85 = scmp.eq.s32.totalorder %s21, 1
      %p86 = scmp.ne.s32.totalorder %s81, %s83
      %p87 = scmp.eq.s32.totalorder %s21, 0
      %p88 = por %p86, %p87
      %p89 = scmp.ne.s32.totalorder %s81, %s83
      %p90 = scmp.eq.s32.totalorder %s26, 1
      %p91 = por %p89, %p90
      %p92 = scmp.ne.s32.totalorder %s83, %s84
      %p93 = scmp.eq.s32.totalorder %s26, 0
      %p94 = por %p92, %p93
      %p95 = scmp.ne.s32.totalorder %s83, %s84
      %p96 = scmp.eq.s32.totalorder %s27, 1
      %p97 = por %p95, %p96
      %p99 = scmp.ne.s32.totalorder %s84, %s98
      %p100 = scmp.eq.s32.totalorder %s27, 0
      %p101 = por %p99, %p100
      %s103 = sadd.s32 %s102, 1
      %p106 = scmp.eq.s32.totalorder %s21, 1
      %p107 = scmp.ne.s32.totalorder %s102, %s104
      %p108 = scmp.eq.s32.totalorder %s21, 0
      %p109 = por %p107, %p108
      %p110 = scmp.ne.s32.totalorder %s102, %s104
      %p111 = scmp.eq.s32.totalorder %s26, 1
      %p112 = por %p110, %p111
      %p113 = scmp.ne.s32.totalorder %s104, %s105
      %p114 = scmp.eq.s32.totalorder %s26, 0
      %p115 = por %p113, %p114
      %p116 = scmp.ne.s32.totalorder %s104, %s105
      %p117 = scmp.eq.s32.totalorder %s27, 1
      %p118 = por %p116, %p117
      %p120 = scmp.ne.s32.totalorder %s105, %s119
      %p121 = scmp.eq.s32.totalorder %s27, 0
      %p122 = por %p120, %p121
      %s124 = sadd.s32 %s123, 1
      %p127 = scmp.eq.s32.totalorder %s21, 1
      %p128 = scmp.ne.s32.totalorder %s123, %s125
      %p129 = scmp.eq.s32.totalorder %s21, 0
      %p130 = por %p128, %p129
      %p131 = scmp.ne.s32.totalorder %s123, %s125
      %p132 = scmp.eq.s32.totalorder %s26, 1
      %p133 = por %p131, %p132
      %p134 = scmp.ne.s32.totalorder %s125, %s126
      %p135 = scmp.eq.s32.totalorder %s26, 0
      %p136 = por %p134, %p135
      %p137 = scmp.ne.s32.totalorder %s125, %s126
      %p138 = scmp.eq.s32.totalorder %s27, 1
      %p139 = por %p137, %p138
      %p141 = scmp.ne.s32.totalorder %s126, %s140
      %p142 = scmp.eq.s32.totalorder %s27, 0
      %p143 = por %p141, %p142
      %s145 = sadd.s32 %s144, 1
      %p148 = scmp.eq.s32.totalorder %s21, 1
      %p149 = scmp.ne.s32.totalorder %s144, %s146
      %p150 = scmp.eq.s32.totalorder %s21, 0
      %p151 = por %p149, %p150
      %p152 = scmp.ne.s32.totalorder %s144, %s146
      %p153 = scmp.eq.s32.totalorder %s26, 1
      %p154 = por %p152, %p153
      %p155 = scmp.ne.s32.totalorder %s146, %s147
      %p156 = scmp.eq.s32.totalorder %s26, 0
      %p157 = por %p155, %p156
      %p158 = scmp.ne.s32.totalorder %s146, %s147
      %p159 = scmp.eq.s32.totalorder %s27, 1
      %p160 = por %p158, %p159
      %p162 = scmp.ne.s32.totalorder %s147, %s161
      %p163 = scmp.eq.s32.totalorder %s27, 0
      %p164 = por %p162, %p163
      %s165 = ssub.s32 %s21, %s28
      %p166 = scmp.eq.s32.totalorder %s165, 0
      %s168 = sadd.s32 %s167, 1
      %s169 = scalar_select %p166, %s167, %s168
      %p172 = pneg %p166
      %p173 = scmp.eq.s32.totalorder %s21, 1
      %p174 = por %p172, %p173
      %p175 = scmp.ne.s32.totalorder %s167, %s170
      %p176 = scmp.eq.s32.totalorder %s21, 0
      %p177 = por %p175, %p176
      %p178 = scmp.ne.s32.totalorder %s167, %s170
      %p179 = scmp.eq.s32.totalorder %s26, 1
      %p180 = por %p178, %p179
      %p181 = scmp.ne.s32.totalorder %s170, %s171
      %p182 = scmp.eq.s32.totalorder %s26, 0
      %p183 = por %p181, %p182
      %p184 = scmp.ne.s32.totalorder %s170, %s171
      %p185 = scmp.eq.s32.totalorder %s27, 1
      %p186 = por %p184, %p185
      %p188 = scmp.ne.s32.totalorder %s171, %s187
      %p189 = scmp.eq.s32.totalorder %s27, 0
      %p190 = por %p188, %p189
      %p191 = scmp.le.s32.totalorder 1, %s21
      %p192 = scmp.lt.s32.totalorder %s21, 3
      %p193 = pnand %p191, %p192
      %p194 = pneg %p193
      // Predicated region
      $region9: #{tpu_custom_call.1} parent=5 // pred_check
        _
      $region10: #{tpu_custom_call.1} parent=5 // pred_check_branch
        %196 = sbr.rel (%p193) target = $region12
      $region11: #{tpu_custom_call.1} parent=5 // pred_region
        %s197 = ssub.s32 %s21, 1
        // Predicated region
        $region13: #{tpu_custom_call.1} parent=11 // pred_check
          %p198 = pneg %p94
        $region14: #{tpu_custom_call.1} parent=11 // pred_check_branch
          %200 = sbr.rel (%p198) target = $region16
        $region15: #{tpu_custom_call.1} parent=11 // pred_region
          %s202 = ssub.s32 2048, 2048
          %203 = vsyncadd [#allocation6], %s202
          %s204 = sshll.u32 [#allocation7], 4
          %s205 = int_to_ptr.vmem [resolvable:$true] %s204
          %210 = dma.hbm_to_vmem [thread:$0]  %s2, 2048, %s205, [#allocation6], 128, 128, 8
        $region16: #{tpu_custom_call.1} parent=11 // pred_fallthru
          _
        // Predicated region
        $region17: #{tpu_custom_call.1} parent=11 // pred_check
          %p211 = pneg %p115
        $region18: #{tpu_custom_call.1} parent=11 // pred_check_branch
          %213 = sbr.rel (%p211) target = $region20
        $region19: #{tpu_custom_call.1} parent=11 // pred_region
          _
        $region20: #{tpu_custom_call.1} parent=11 // pred_fallthru
          _
        // Predicated region
        $region21: #{tpu_custom_call.1} parent=11 // pred_check
          %p214 = pneg %p136
        $region22: #{tpu_custom_call.1} parent=11 // pred_check_branch
          %216 = sbr.rel (%p214) target = $region24
        $region23: #{tpu_custom_call.1} parent=11 // pred_region
          _
        $region24: #{tpu_custom_call.1} parent=11 // pred_fallthru
          _
        // Predicated region
        $region25: #{tpu_custom_call.1} parent=11 // pred_check
          %p217 = pneg %p157
        $region26: #{tpu_custom_call.1} parent=11 // pred_check_branch
          %219 = sbr.rel (%p217) target = $region28
        $region27: #{tpu_custom_call.1} parent=11 // pred_region
          _
        $region28: #{tpu_custom_call.1} parent=11 // pred_fallthru
          _
      $region12: #{tpu_custom_call.1} parent=5 // pred_fallthru
        _
      %p220 = scmp.lt.s32.totalorder %s21, 2
      // Predicated region
      $region29: #{tpu_custom_call.1} parent=5 // pred_check
        %p221 = pneg %p220
      $region30: #{tpu_custom_call.1} parent=5 // pred_check_branch
        %223 = sbr.rel (%p221) target = $region32
      $region31: #{tpu_custom_call.1} parent=5 // pred_region
        // Predicated region
        $region33: #{tpu_custom_call.1} parent=31 // pred_check
          %p224 = pneg %p41
        $region34: #{tpu_custom_call.1} parent=31 // pred_check_branch
          %226 = sbr.rel (%p224) target = $region36
        $region35: #{tpu_custom_call.1} parent=31 // pred_region
          %s227 = sand.u32 %s31, 1
          %s228 = scalar_lea.sflag [#allocation3], %s227
          %s229 = sand.u32 %s31, 1
          %s230 = smul.addr %s229, 16
          %s231 = scalar_lea.vmem [#allocation2], %s230
          %s232 = smul.u32 2, %s21
          %s233 = ssub.s32 3, %s232
          %p234 = scmp.lt.s32.totalorder %s233, 2
          %s235 = scalar_select %p234, %s233, 2
          %s236 = smul.u32 128, %s235
          %s238 = ssub.s32 256, %s236
          %239 = vsyncadd %s228, %s238
          %p240 = scmp.ne.s32.totalorder 0, %s236
          %s241 = smul.addr %s232, 128
          %s242 = scalar_lea.hbm %s0, %s241
          %s243 = smul.u32 8, %s235
          %s244 = sshll.u32 %s231, 4
          %s245 = int_to_ptr.vmem [resolvable:$true] %s244
          %s246 = sshll.u32 %s243, 4
          %250 = dma.hbm_to_vmem [thread:$0]  (%p240), %s242, %s246, %s245, %s228, 128, 128, 8
        $region36: #{tpu_custom_call.1} parent=31 // pred_fallthru
          _
        // Predicated region
        $region37: #{tpu_custom_call.1} parent=31 // pred_check
          %p251 = pneg %p67
        $region38: #{tpu_custom_call.1} parent=31 // pred_check_branch
          %253 = sbr.rel (%p251) target = $region40
        $region39: #{tpu_custom_call.1} parent=31 // pred_region
          %s254 = sand.u32 %s21, 1
          %s255 = scalar_lea.sflag [#allocation6], %s254
          %s256 = sand.u32 %s57, 1
          %s257 = smul.addr %s256, 16
          %s258 = scalar_lea.vmem [#allocation5], %s257
          %s259 = smul.u32 2, %s21
          %s260 = ssub.s32 3, %s259
          %p261 = scmp.lt.s32.totalorder %s260, 2
          %s262 = scalar_select %p261, %s260, 2
          %s263 = smul.u32 128, %s262
          %s265 = ssub.s32 256, %s263
          %266 = vsyncadd %s255, %s265
          %p267 = scmp.ne.s32.totalorder 0, %s263
          %s268 = smul.addr %s259, 128
          %s269 = scalar_lea.hbm %s1, %s268
          %s270 = smul.u32 8, %s262
          %s271 = sshll.u32 %s258, 4
          %s272 = int_to_ptr.vmem [resolvable:$true] %s271
          %s273 = sshll.u32 %s270, 4
          %277 = dma.hbm_to_vmem [thread:$0]  (%p267), %s269, %s273, %s272, %s255, 128, 128, 8
        $region40: #{tpu_custom_call.1} parent=31 // pred_fallthru
          _
      $region32: #{tpu_custom_call.1} parent=5 // pred_fallthru
        _
      %p278 = scmp.le.s32.totalorder 1, %s21
      %p279 = scmp.lt.s32.totalorder %s21, 3
      %p280 = pnand %p278, %p279
      %p281 = pneg %p280
      // Predicated region
      $region41: #{tpu_custom_call.1} parent=5 // pred_check
        _
      $region42: #{tpu_custom_call.1} parent=5 // pred_check_branch
        %283 = sbr.rel (%p280) target = $region44
      $region43: #{tpu_custom_call.1} parent=5 // pred_region
        %s284 = ssub.s32 %s21, 1
        %s285 = sand.u32 %s34, 1
        %s286 = scalar_lea.sflag [#allocation3], %s285
        %s287 = sand.u32 %s34, 1
        %s288 = smul.addr %s287, 16
        %s289 = scalar_lea.vmem [#allocation2], %s288
        // Predicated region
        $region45: #{tpu_custom_call.1} parent=43 // pred_check
          %p290 = pneg %p47
        $region46: #{tpu_custom_call.1} parent=43 // pred_check_branch
          %292 = sbr.rel (%p290) target = $region48
        $region47: #{tpu_custom_call.1} parent=43 // pred_region
          %293 = dma.done %s286, 256
        $region48: #{tpu_custom_call.1} parent=43 // pred_fallthru
          _
        %s294 = sand.u32 %s26, 1
        %s295 = scalar_lea.sflag [#allocation6], %s294
        %s296 = sand.u32 %s60, 1
        %s297 = smul.addr %s296, 16
        %s298 = scalar_lea.vmem [#allocation5], %s297
        // Predicated region
        $region49: #{tpu_custom_call.1} parent=43 // pred_check
          %p299 = pneg %p73
        $region50: #{tpu_custom_call.1} parent=43 // pred_check_branch
          %301 = sbr.rel (%p299) target = $region52
        $region51: #{tpu_custom_call.1} parent=43 // pred_region
          %302 = dma.done %s295, 256
        $region52: #{tpu_custom_call.1} parent=43 // pred_fallthru
          _
        // Predicated region
        $region53: #{tpu_custom_call.1} parent=43 // pred_check
          %p303 = pneg %p94
        $region54: #{tpu_custom_call.1} parent=43 // pred_check_branch
          %305 = sbr.rel (%p303) target = $region56
        $region55: #{tpu_custom_call.1} parent=43 // pred_region
          %306 = dma.done [#allocation6], 2048
        $region56: #{tpu_custom_call.1} parent=43 // pred_fallthru
          _
        %s307 = sand.u32 %s34, 1
        %s308 = scalar_lea.sflag [#allocation3], %s307
        %s309 = sand.u32 %s34, 1
        %s310 = smul.addr %s309, 16
        %s311 = scalar_lea.vmem [#allocation2], %s310
        %p312 = pneg %p47
        %p313 = pneg %p44
        %s314 = sand.u32 %s26, 1
        %s315 = scalar_lea.sflag [#allocation6], %s314
        %s316 = sand.u32 %s60, 1
        %s317 = smul.addr %s316, 16
        %s318 = scalar_lea.vmem [#allocation5], %s317
        %p319 = pneg %p73
        %p320 = pneg %p70
        %p321 = pneg %p94
        %p322 = pneg %p91
        %p323 = pneg %p115
        %p324 = pneg %p112
        %p325 = pneg %p136
        %p326 = pneg %p133
        %p327 = pneg %p157
        %p328 = pneg %p154
        %p329 = pneg %p183
        %p330 = pneg %p180
        %s331 = sand.u32 %s170, 1
        %s332 = scalar_lea.sflag [#allocation4], %s331
        %s333 = sand.u32 %s170, 1
        %s334 = smul.addr %s333, 16
        %s335 = scalar_lea.vmem [#allocation8], %s334
        %s336 = smul.u32 2, %s26
        %s337 = ssub.s32 3, %s336
        %p338 = scmp.lt.s32.totalorder %s337, 2
        %s339 = scalar_select %p338, %s337, 2
        %s340 = smul.u32 128, %s339
        %s341 = smul.u32 2, %s26
        %s342 = ssub.s32 3, %s341
        %p343 = scmp.lt.s32.totalorder %s342, 2
        %s344 = scalar_select %p343, %s342, 2
        %s345 = smul.u32 128, %s344
        %s346 = smul.u32 2, %s26
        %s347 = ssub.s32 3, %s346
        %p348 = scmp.lt.s32.totalorder %s347, 2
        %s349 = scalar_select %p348, %s347, 2
        %s350 = smul.u32 128, %s349
        %v351 = vld [vmem:[%s289] sm:$0xff]
        %v352 = vld [vmem:[%s289 + $0x8] sm:$0xff]
        %v353 = vld [vmem:[#allocation7] sm:$0xff]
        %v354 = vld [vmem:[#allocation7 + $0x8] sm:$0xff]
        %v355 = vld [vmem:[#allocation7 + $0x10] sm:$0xff]
        %v356 = vld [vmem:[#allocation7 + $0x18] sm:$0xff]
        %v357 = vld [vmem:[#allocation7 + $0x20] sm:$0xff]
        %v358 = vld [vmem:[#allocation7 + $0x28] sm:$0xff]
        %v359 = vld [vmem:[#allocation7 + $0x30] sm:$0xff]
        %v360 = vld [vmem:[#allocation7 + $0x38] sm:$0xff]
        %v361 = vld [vmem:[#allocation7 + $0x40] sm:$0xff]
        %v362 = vld [vmem:[#allocation7 + $0x48] sm:$0xff]
        %v363 = vld [vmem:[#allocation7 + $0x50] sm:$0xff]
        %v364 = vld [vmem:[#allocation7 + $0x58] sm:$0xff]
        %v365 = vld [vmem:[#allocation7 + $0x60] sm:$0xff]
        %v366 = vld [vmem:[#allocation7 + $0x68] sm:$0xff]
        %v367 = vld [vmem:[#allocation7 + $0x70] sm:$0xff]
        %v368 = vld [vmem:[#allocation7 + $0x78] sm:$0xff]
        %v369 = vld [vmem:[%s3] sm:$0x1]
        %v371 = vlaneseq
        %v372 = vshrl.u32 %v371, 7
        %v373 = vsub.s32 0, %v372
        %v374 = vrot.slane %v369, %v373
        %376 = vmatprep.subr.mxu0 0.0
        %377 = vmatpush1.msra.mxu0 %v353
        %378 = vmatprep.subr.mxu0 0.0
        %379 = vmatpush1.msra.mxu0 %v354
        %380 = vmatprep.subr.mxu0 0.0
        %381 = vmatpush1.msra.mxu0 %v355
        %382 = vmatprep.subr.mxu0 0.0
        %383 = vmatpush1.msra.mxu0 %v356
        %384 = vmatprep.subr.mxu0 0.0
        %385 = vmatpush1.msra.mxu0 %v357
        %386 = vmatprep.subr.mxu0 0.0
        %387 = vmatpush1.msra.mxu0 %v358
        %388 = vmatprep.subr.mxu0 0.0
        %389 = vmatpush1.msra.mxu0 %v359
        %390 = vmatprep.subr.mxu0 0.0
        %391 = vmatpush1.msra.mxu0 %v360
        %392 = vmatprep.subr.mxu0 0.0
        %393 = vmatpush1.msra.mxu0 %v361
        %394 = vmatprep.subr.mxu0 0.0
        %395 = vmatpush1.msra.mxu0 %v362
        %396 = vmatprep.subr.mxu0 0.0
        %397 = vmatpush1.msra.mxu0 %v363
        %398 = vmatprep.subr.mxu0 0.0
        %399 = vmatpush1.msra.mxu0 %v364
        %400 = vmatprep.subr.mxu0 0.0
        %401 = vmatpush1.msra.mxu0 %v365
        %402 = vmatprep.subr.mxu0 0.0
        %403 = vmatpush1.msra.mxu0 %v366
        %404 = vmatprep.subr.mxu0 0.0
        %405 = vmatpush1.msra.mxu0 %v367
        %406 = vmatprep.subr.mxu0 0.0
        %407 = vmatpush1.msra.mxu0 %v368
        %408 = vmatprep.subr.mxu0 0.0
        %409 = vmatpush1.msra.mxu0 0.0
        %410 = vmatprep.subr.mxu0 0.0
        %411 = vmatpush1.msra.mxu0 0.0
        %412 = vmatprep.subr.mxu0 0.0
        %413 = vmatpush1.msra.mxu0 0.0
        %414 = vmatprep.subr.mxu0 0.0
        %415 = vmatpush1.msra.mxu0 0.0
        %416 = vmatprep.subr.mxu0 0.0
        %417 = vmatpush1.msra.mxu0 0.0
        %418 = vmatprep.subr.mxu0 0.0
        %419 = vmatpush1.msra.mxu0 0.0
        %420 = vmatprep.subr.mxu0 0.0
        %421 = vmatpush1.msra.mxu0 0.0
        %422 = vmatprep.subr.mxu0 0.0
        %423 = vmatpush1.msra.mxu0 0.0
        %424 = vmatprep.subr.mxu0 0.0
        %425 = vmatpush1.msra.mxu0 0.0
        %426 = vmatprep.subr.mxu0 0.0
        %427 = vmatpush1.msra.mxu0 0.0
        %428 = vmatprep.subr.mxu0 0.0
        %429 = vmatpush1.msra.mxu0 0.0
        %430 = vmatprep.subr.mxu0 0.0
        %431 = vmatpush1.msra.mxu0 0.0
        %432 = vmatprep.subr.mxu0 0.0
        %433 = vmatpush1.msra.mxu0 0.0
        %434 = vmatprep.subr.mxu0 0.0
        %435 = vmatpush1.msra.mxu0 0.0
        %436 = vmatprep.subr.mxu0 0.0
        %437 = vmatpush1.msra.mxu0 0.0
        %438 = vmatprep.subr.mxu0 0.0
        %439 = vmatpush1.msra.mxu0 0.0
        %440 = vmatprep.mubr.f32.mxu0 0.0
        %441 = vmatmul.mubr.f32.gmra.mrb[0].mxu0 %v351
        %v442 = vpop.f32.mrb[0].mxu0
        %v443 = vadd.f32 %v374, %v442
        %v444 = vpop.f32.mrb[0].mxu0
        %445 = vmatprep.mubr.f32.mxu0 0.0
        %446 = vmatmul.mubr.f32.gmra.mrb[0].mxu0 %v352
        %v447 = vpop.f32.mrb[0].mxu0
        %v448 = vadd.f32 %v374, %v447
        %v449 = vpop.f32.mrb[0].mxu0
        %450 = vdwg.mxu0
        %v451 = vld [vmem:[%s298] sm:$0xff]
        %v452 = vld [vmem:[%s298 + $0x8] sm:$0xff]
        %v453 = vadd.f32 %v443, %v451
        %v454 = vadd.f32 %v448, %v452
        %455 = vadd.xlane.f32.xlu0 %v453
        %v456 = vpop.xlane.xlu0 %455
        %457 = vadd.xlane.f32.xlu0 %v454
        %v458 = vpop.xlane.xlu0 %457
        %v459 = vrcp.pop 128.0
        %v460 = vmul.f32 %v456, %v459
        %v461 = vmul.f32 %v458, %v459
        %v462 = vmul.f32 %v453, %v453
        %v463 = vmul.f32 %v454, %v454
        %464 = vadd.xlane.f32.xlu0 %v462
        %v465 = vpop.xlane.xlu0 %464
        %466 = vadd.xlane.f32.xlu0 %v463
        %v467 = vpop.xlane.xlu0 %466
        %v468 = vmul.f32 %v465, %v459
        %v469 = vmul.f32 %v467, %v459
        %v470 = vmul.f32 %v460, %v460
        %v471 = vmul.f32 %v461, %v461
        %v472 = vsub.f32 %v468, %v470
        %v473 = vsub.f32 %v469, %v471
        %v474 = vmax.f32 %v472, 0.0
        %v475 = vmax.f32 %v473, 0.0
        %v476 = vadd.f32 %v474, 1e-12
        %v477 = vadd.f32 %v475, 1e-12
        %v478 = vrsqrt.pop %v476
        %v479 = vrsqrt.pop %v477
        %v480 = vsub.f32 %v453, %v460
        %v481 = vsub.f32 %v454, %v461
        %v482 = vmul.f32 %v480, %v478
        %v483 = vmul.f32 %v481, %v479
        %v484 = vld [vmem:[%s4] sm:$0x1]
        %v486 = vlaneseq
        %v487 = vshrl.u32 %v486, 7
        %v488 = vsub.s32 0, %v487
        %v489 = vrot.slane %v484, %v488
        %v491 = vmul.f32 %v482, %v489
        %v492 = vmul.f32 %v483, %v489
        %v493 = vld [vmem:[%s5] sm:$0x1]
        %v495 = vlaneseq
        %v496 = vshrl.u32 %v495, 7
        %v497 = vsub.s32 0, %v496
        %v498 = vrot.slane %v493, %v497
        %v500 = vadd.f32 %v491, %v498
        %v501 = vadd.f32 %v492, %v498
        %502 = vst [vmem:[%s335] sm:$0xff] %v500
        %503 = vst [vmem:[%s335 + $0x8] sm:$0xff] %v501
        %s504 = sand.u32 %s170, 1
        %s505 = scalar_lea.sflag [#allocation4], %s504
        %s506 = sand.u32 %s170, 1
        %s507 = smul.addr %s506, 16
        %s508 = scalar_lea.vmem [#allocation8], %s507
        // Predicated region
        $region57: #{tpu_custom_call.1} parent=43 // pred_check
          %p509 = pneg %p180
        $region58: #{tpu_custom_call.1} parent=43 // pred_check_branch
          %511 = sbr.rel (%p509) target = $region60
        $region59: #{tpu_custom_call.1} parent=43 // pred_region
          %s512 = smul.u32 2, %s26
          %s513 = ssub.s32 3, %s512
          %p514 = scmp.lt.s32.totalorder %s513, 2
          %s515 = scalar_select %p514, %s513, 2
          %s516 = smul.u32 128, %s515
          %s518 = ssub.s32 256, %s516
          %519 = vsyncadd %s505, %s518
          %p520 = scmp.ne.s32.totalorder 0, %s516
          %s521 = smul.addr %s512, 128
          %s522 = scalar_lea.hbm %s6, %s521
          %s523 = smul.u32 8, %s515
          %s524 = sshll.u32 %s508, 4
          %s525 = int_to_ptr.vmem [resolvable:$true] %s524
          %s526 = sshll.u32 %s523, 4
          %530 = dma.vmem_to_hbm [thread:$0]  (%p520), %s525, %s526, %s522, %s505, 128, 128, 8
        $region60: #{tpu_custom_call.1} parent=43 // pred_fallthru
          _
      $region44: #{tpu_custom_call.1} parent=5 // pred_fallthru
        _
      %p531 = scmp.le.s32.totalorder 2, %s21
      // Predicated region
      $region61: #{tpu_custom_call.1} parent=5 // pred_check
        %p532 = pneg %p531
      $region62: #{tpu_custom_call.1} parent=5 // pred_check_branch
        %534 = sbr.rel (%p532) target = $region64
      $region63: #{tpu_custom_call.1} parent=5 // pred_region
        %s535 = ssub.s32 %s21, 2
        // Predicated region
        $region65: #{tpu_custom_call.1} parent=63 // pred_check
          %p536 = pneg %p186
        $region66: #{tpu_custom_call.1} parent=63 // pred_check_branch
          %538 = sbr.rel (%p536) target = $region68
        $region67: #{tpu_custom_call.1} parent=63 // pred_region
          %s539 = sand.u32 %s171, 1
          %s540 = scalar_lea.sflag [#allocation4], %s539
          %s541 = sand.u32 %s171, 1
          %s542 = smul.addr %s541, 16
          %s543 = scalar_lea.vmem [#allocation8], %s542
          %544 = dma.done %s540, 256
        $region68: #{tpu_custom_call.1} parent=63 // pred_fallthru
          _
      $region64: #{tpu_custom_call.1} parent=5 // pred_fallthru
        _
    $region6: #{tpu_custom_call.1} parent=1 // loop_footer
      %s25 = sadd.s32 1, %s21
    $region7: #{tpu_custom_call.1} parent=1 // loop_footer_branch
      %20 = sbr.rel target = $region3
    $region8: #{tpu_custom_call.1} parent=1 // loop_exit
      _
    %545 = vsyncpa [#allocation3], 1
    %s546 = scalar_lea.sflag [#allocation3], 1
    %547 = vsyncpa %s546, 1
    %548 = vsyncpa [#allocation6], 1
    %s549 = scalar_lea.sflag [#allocation6], 1
    %550 = vsyncpa %s549, 1
    %551 = vsyncpa [#allocation4], 1
    %s552 = scalar_lea.sflag [#allocation4], 1
    %553 = vsyncpa %s552, 1

// kernel: tpu_custom_call.1
$region0: #{tpu_custom_call.1}
  #allocation0 [shape = 'u32[]', space=smem, size = 0x4, offset = 0x4, fixed_abs, tag = 'smem constant byte address 0x4 - core index']
  #allocation1 [shape = 'u32[144,128]{1,0:T(1,128)}', space=vmem, size = 0x12000, scoped, tag = 'internal scratch']
  %s0 = inlined_call_operand.hbm [shape: f32[24,128], index: 0, kind: input, shape index: {}]
  %s1 = inlined_call_operand.hbm [shape: f32[24,128], index: 1, kind: input, shape index: {}]
  %s2 = inlined_call_operand.hbm [shape: f32[128,128], index: 2, kind: input, shape index: {}]
  %s3 = inlined_call_operand.vmem [shape: f32[1,128], index: 3, kind: input, shape index: {}]
  %s4 = inlined_call_operand.vmem [shape: f32[1,128], index: 4, kind: input, shape index: {}]
  %s5 = inlined_call_operand.vmem [shape: f32[1,128], index: 5, kind: input, shape index: {}]
  %s6 = inlined_call_operand.hbm [shape: f32[24,128], index: 6, kind: output, shape index: {}]
  %s7 = sld [smem:[#allocation0]]
  $region69: #{tpu_custom_call.1} parent=0
    _
  %s9 = ssub.s32 1, %s7
  %s10 = scalar_select 0, %s9, %s7
  $region1: #{tpu_custom_call.1} parent=0
    #allocation2 [shape = 'u8[16384]{0}', space=vmem, size = 0x4000, scoped, tag = 'input window, operand 0']
    #allocation3 [shape = 's32[2]{0}', space=sflag, size = 0x8, scoped, tag = 'scoped memory for tpu_custom_call.1']
    #allocation4 [shape = 's32[2]{0}', space=sflag, size = 0x8, scoped, tag = 'scoped memory for tpu_custom_call.1']
    #allocation5 [shape = 'u8[16384]{0}', space=vmem, size = 0x4000, scoped, tag = 'input window, operand 1']
    #allocation6 [shape = 's32[2]{0}', space=sflag, size = 0x8, scoped, tag = 'scoped memory for tpu_custom_call.1']
    #allocation7 [shape = 'u8[65536]{0}', space=vmem, size = 0x10000, scoped, tag = 'input window, operand 2, single buffered']
    #allocation8 [shape = 'u8[16384]{0}', space=vmem, size = 0x4000, scoped, tag = 'output window, operand 0']
    %11 = vsyncpa [#allocation3], 0
    %s12 = scalar_lea.sflag [#allocation3], 1
    %13 = vsyncpa %s12, 0
    %14 = vsyncpa [#allocation6], 0
    %s15 = scalar_lea.sflag [#allocation6], 1
    %16 = vsyncpa %s15, 0
    %17 = vsyncpa [#allocation4], 0
    %s18 = scalar_lea.sflag [#allocation4], 1
    %19 = vsyncpa %s18, 0
    loop: start=0, step=1, limit=4
    $region2: #{tpu_custom_call.1} parent=1 // loop_pre_header
      _
    $region3: #{tpu_custom_call.1} parent=1 // loop_header
      %s21 = sphi 0, %s25
      %p22 = scmp.ge.s32.totalorder %s21, 4
      %s31 = sphi 0, %s33
      %s34 = sphi 0, %s31
      %s35 = sphi 0, %s34
      %s51 = sphi 0, %s35
      %s57 = sphi 0, %s59
      %s60 = sphi 0, %s57
      %s61 = sphi 0, %s60
      %s77 = sphi 0, %s61
      %s81 = sphi 0, %s81
      %s83 = sphi 0, %s81
      %s84 = sphi 0, %s83
      %s98 = sphi 0, %s84
      %s102 = sphi 0, %s102
      %s104 = sphi 0, %s102
      %s105 = sphi 0, %s104
      %s119 = sphi 0, %s105
      %s123 = sphi 0, %s123
      %s125 = sphi 0, %s123
      %s126 = sphi 0, %s125
      %s140 = sphi 0, %s126
      %s144 = sphi 0, %s144
      %s146 = sphi 0, %s144
      %s147 = sphi 0, %s146
      %s161 = sphi 0, %s147
      %s167 = sphi 0, %s169
      %s170 = sphi 0, %s167
      %s171 = sphi 0, %s170
      %s187 = sphi 0, %s171
    $region4: #{tpu_custom_call.1} parent=1 // loop_header_branch
      %24 = sbr.rel (%p22) target = $region8
    $region5: #{tpu_custom_call.1} parent=1 // loop_body
      %s26 = ssub.s32 %s21, 1
      %s27 = ssub.s32 %s21, 2
      %s28 = sadd.s32 %s21, 1
      %s29 = ssub.s32 %s21, %s28
      %p30 = scmp.eq.s32.totalorder %s29, 0
      %s32 = sadd.s32 %s31, 1
      %s33 = scalar_select %p30, %s31, %s32
      %p36 = pneg %p30
      %p37 = scmp.eq.s32.totalorder %s21, 1
      %p38 = por %p36, %p37
      %p39 = scmp.ne.s32.totalorder %s31, %s34
      %p40 = scmp.eq.s32.totalorder %s21, 0
      %p41 = por %p39, %p40
      %p42 = scmp.ne.s32.totalorder %s31, %s34
      %p43 = scmp.eq.s32.totalorder %s26, 1
      %p44 = por %p42, %p43
      %p45 = scmp.ne.s32.totalorder %s34, %s35
      %p46 = scmp.eq.s32.totalorder %s26, 0
      %p47 = por %p45, %p46
      %p48 = scmp.ne.s32.totalorder %s34, %s35
      %p49 = scmp.eq.s32.totalorder %s27, 1
      %p50 = por %p48, %p49
      %p52 = scmp.ne.s32.totalorder %s35, %s51
      %p53 = scmp.eq.s32.totalorder %s27, 0
      %p54 = por %p52, %p53
      %s55 = ssub.s32 %s21, %s28
      %p56 = scmp.eq.s32.totalorder %s55, 0
      %s58 = sadd.s32 %s57, 1
      %s59 = scalar_select %p56, %s57, %s58
      %p62 = pneg %p56
      %p63 = scmp.eq.s32.totalorder %s21, 1
      %p64 = por %p62, %p63
      %p65 = scmp.ne.s32.totalorder %s57, %s60
      %p66 = scmp.eq.s32.totalorder %s21, 0
      %p67 = por %p65, %p66
      %p68 = scmp.ne.s32.totalorder %s57, %s60
      %p69 = scmp.eq.s32.totalorder %s26, 1
      %p70 = por %p68, %p69
      %p71 = scmp.ne.s32.totalorder %s60, %s61
      %p72 = scmp.eq.s32.totalorder %s26, 0
      %p73 = por %p71, %p72
      %p74 = scmp.ne.s32.totalorder %s60, %s61
      %p75 = scmp.eq.s32.totalorder %s27, 1
      %p76 = por %p74, %p75
      %p78 = scmp.ne.s32.totalorder %s61, %s77
      %p79 = scmp.eq.s32.totalorder %s27, 0
      %p80 = por %p78, %p79
      %s82 = sadd.s32 %s81, 1
      %p85 = scmp.eq.s32.totalorder %s21, 1
      %p86 = scmp.ne.s32.totalorder %s81, %s83
      %p87 = scmp.eq.s32.totalorder %s21, 0
      %p88 = por %p86, %p87
      %p89 = scmp.ne.s32.totalorder %s81, %s83
      %p90 = scmp.eq.s32.totalorder %s26, 1
      %p91 = por %p89, %p90
      %p92 = scmp.ne.s32.totalorder %s83, %s84
      %p93 = scmp.eq.s32.totalorder %s26, 0
      %p94 = por %p92, %p93
      %p95 = scmp.ne.s32.totalorder %s83, %s84
      %p96 = scmp.eq.s32.totalorder %s27, 1
      %p97 = por %p95, %p96
      %p99 = scmp.ne.s32.totalorder %s84, %s98
      %p100 = scmp.eq.s32.totalorder %s27, 0
      %p101 = por %p99, %p100
      %s103 = sadd.s32 %s102, 1
      %p106 = scmp.eq.s32.totalorder %s21, 1
      %p107 = scmp.ne.s32.totalorder %s102, %s104
      %p108 = scmp.eq.s32.totalorder %s21, 0
      %p109 = por %p107, %p108
      %p110 = scmp.ne.s32.totalorder %s102, %s104
      %p111 = scmp.eq.s32.totalorder %s26, 1
      %p112 = por %p110, %p111
      %p113 = scmp.ne.s32.totalorder %s104, %s105
      %p114 = scmp.eq.s32.totalorder %s26, 0
      %p115 = por %p113, %p114
      %p116 = scmp.ne.s32.totalorder %s104, %s105
      %p117 = scmp.eq.s32.totalorder %s27, 1
      %p118 = por %p116, %p117
      %p120 = scmp.ne.s32.totalorder %s105, %s119
      %p121 = scmp.eq.s32.totalorder %s27, 0
      %p122 = por %p120, %p121
      %s124 = sadd.s32 %s123, 1
      %p127 = scmp.eq.s32.totalorder %s21, 1
      %p128 = scmp.ne.s32.totalorder %s123, %s125
      %p129 = scmp.eq.s32.totalorder %s21, 0
      %p130 = por %p128, %p129
      %p131 = scmp.ne.s32.totalorder %s123, %s125
      %p132 = scmp.eq.s32.totalorder %s26, 1
      %p133 = por %p131, %p132
      %p134 = scmp.ne.s32.totalorder %s125, %s126
      %p135 = scmp.eq.s32.totalorder %s26, 0
      %p136 = por %p134, %p135
      %p137 = scmp.ne.s32.totalorder %s125, %s126
      %p138 = scmp.eq.s32.totalorder %s27, 1
      %p139 = por %p137, %p138
      %p141 = scmp.ne.s32.totalorder %s126, %s140
      %p142 = scmp.eq.s32.totalorder %s27, 0
      %p143 = por %p141, %p142
      %s145 = sadd.s32 %s144, 1
      %p148 = scmp.eq.s32.totalorder %s21, 1
      %p149 = scmp.ne.s32.totalorder %s144, %s146
      %p150 = scmp.eq.s32.totalorder %s21, 0
      %p151 = por %p149, %p150
      %p152 = scmp.ne.s32.totalorder %s144, %s146
      %p153 = scmp.eq.s32.totalorder %s26, 1
      %p154 = por %p152, %p153
      %p155 = scmp.ne.s32.totalorder %s146, %s147
      %p156 = scmp.eq.s32.totalorder %s26, 0
      %p157 = por %p155, %p156
      %p158 = scmp.ne.s32.totalorder %s146, %s147
      %p159 = scmp.eq.s32.totalorder %s27, 1
      %p160 = por %p158, %p159
      %p162 = scmp.ne.s32.totalorder %s147, %s161
      %p163 = scmp.eq.s32.totalorder %s27, 0
      %p164 = por %p162, %p163
      %s165 = ssub.s32 %s21, %s28
      %p166 = scmp.eq.s32.totalorder %s165, 0
      %s168 = sadd.s32 %s167, 1
      %s169 = scalar_select %p166, %s167, %s168
      %p172 = pneg %p166
      %p173 = scmp.eq.s32.totalorder %s21, 1
      %p174 = por %p172, %p173
      %p175 = scmp.ne.s32.totalorder %s167, %s170
      %p176 = scmp.eq.s32.totalorder %s21, 0
      %p177 = por %p175, %p176
      %p178 = scmp.ne.s32.totalorder %s167, %s170
      %p179 = scmp.eq.s32.totalorder %s26, 1
      %p180 = por %p178, %p179
      %p181 = scmp.ne.s32.totalorder %s170, %s171
      %p182 = scmp.eq.s32.totalorder %s26, 0
      %p183 = por %p181, %p182
      %p184 = scmp.ne.s32.totalorder %s170, %s171
      %p185 = scmp.eq.s32.totalorder %s27, 1
      %p186 = por %p184, %p185
      %p188 = scmp.ne.s32.totalorder %s171, %s187
      %p189 = scmp.eq.s32.totalorder %s27, 0
      %p190 = por %p188, %p189
      %p191 = scmp.le.s32.totalorder 1, %s21
      %p192 = scmp.lt.s32.totalorder %s21, 3
      %p193 = pnand %p191, %p192
      %p194 = pneg %p193
      // Predicated region
      $region9: #{tpu_custom_call.1} parent=5 // pred_check
        _
      $region10: #{tpu_custom_call.1} parent=5 // pred_check_branch
        %196 = sbr.rel (%p193) target = $region12
      $region11: #{tpu_custom_call.1} parent=5 // pred_region
        %s197 = ssub.s32 %s21, 1
        // Predicated region
        $region13: #{tpu_custom_call.1} parent=11 // pred_check
          %p198 = pneg %p94
        $region14: #{tpu_custom_call.1} parent=11 // pred_check_branch
          %200 = sbr.rel (%p198) target = $region16
        $region15: #{tpu_custom_call.1} parent=11 // pred_region
          %s202 = ssub.s32 2048, 2048
          %203 = vsyncadd [#allocation6], %s202
          %s204 = sshll.u32 [#allocation7], 4
          %s205 = int_to_ptr.vmem [resolvable:$true] %s204
          %210 = dma.hbm_to_vmem [thread:$0]  %s2, 2048, %s205, [#allocation6], 128, 128, 8
        $region16: #{tpu_custom_call.1} parent=11 // pred_fallthru
          _
        // Predicated region
        $region17: #{tpu_custom_call.1} parent=11 // pred_check
          %p211 = pneg %p115
        $region18: #{tpu_custom_call.1} parent=11 // pred_check_branch
          %213 = sbr.rel (%p211) target = $region20
        $region19: #{tpu_custom_call.1} parent=11 // pred_region
          _
        $region20: #{tpu_custom_call.1} parent=11 // pred_fallthru
          _
        // Predicated region
        $region21: #{tpu_custom_call.1} parent=11 // pred_check
          %p214 = pneg %p136
        $region22: #{tpu_custom_call.1} parent=11 // pred_check_branch
          %216 = sbr.rel (%p214) target = $region24
        $region23: #{tpu_custom_call.1} parent=11 // pred_region
          _
        $region24: #{tpu_custom_call.1} parent=11 // pred_fallthru
          _
        // Predicated region
        $region25: #{tpu_custom_call.1} parent=11 // pred_check
          %p217 = pneg %p157
        $region26: #{tpu_custom_call.1} parent=11 // pred_check_branch
          %219 = sbr.rel (%p217) target = $region28
        $region27: #{tpu_custom_call.1} parent=11 // pred_region
          _
        $region28: #{tpu_custom_call.1} parent=11 // pred_fallthru
          _
      $region12: #{tpu_custom_call.1} parent=5 // pred_fallthru
        _
      %p220 = scmp.lt.s32.totalorder %s21, 2
      // Predicated region
      $region29: #{tpu_custom_call.1} parent=5 // pred_check
        %p221 = pneg %p220
      $region30: #{tpu_custom_call.1} parent=5 // pred_check_branch
        %223 = sbr.rel (%p221) target = $region32
      $region31: #{tpu_custom_call.1} parent=5 // pred_region
        // Predicated region
        $region33: #{tpu_custom_call.1} parent=31 // pred_check
          %p224 = pneg %p41
        $region34: #{tpu_custom_call.1} parent=31 // pred_check_branch
          %226 = sbr.rel (%p224) target = $region36
        $region35: #{tpu_custom_call.1} parent=31 // pred_region
          %s227 = sand.u32 %s31, 1
          %s228 = scalar_lea.sflag [#allocation3], %s227
          %s229 = sand.u32 %s31, 1
          %s230 = smul.addr %s229, 16
          %s231 = scalar_lea.vmem [#allocation2], %s230
          %s232 = smul.u32 2, %s21
          %s233 = ssub.s32 3, %s232
          %p234 = scmp.lt.s32.totalorder %s233, 2
          %s235 = scalar_select %p234, %s233, 2
          %s236 = smul.u32 128, %s235
          %s238 = ssub.s32 256, %s236
          %239 = vsyncadd %s228, %s238
          %p240 = scmp.ne.s32.totalorder 0, %s236
          %s241 = smul.addr %s232, 128
          %s242 = scalar_lea.hbm %s0, %s241
          %s243 = smul.u32 8, %s235
          %s244 = sshll.u32 %s231, 4
          %s245 = int_to_ptr.vmem [resolvable:$true] %s244
          %s246 = sshll.u32 %s243, 4
          %250 = dma.hbm_to_vmem [thread:$0]  (%p240), %s242, %s246, %s245, %s228, 128, 128, 8
        $region36: #{tpu_custom_call.1} parent=31 // pred_fallthru
          _
        // Predicated region
        $region37: #{tpu_custom_call.1} parent=31 // pred_check
          %p251 = pneg %p67
        $region38: #{tpu_custom_call.1} parent=31 // pred_check_branch
          %253 = sbr.rel (%p251) target = $region40
        $region39: #{tpu_custom_call.1} parent=31 // pred_region
          %s254 = sand.u32 %s21, 1
          %s255 = scalar_lea.sflag [#allocation6], %s254
          %s256 = sand.u32 %s57, 1
          %s257 = smul.addr %s256, 16
          %s258 = scalar_lea.vmem [#allocation5], %s257
          %s259 = smul.u32 2, %s21
          %s260 = ssub.s32 3, %s259
          %p261 = scmp.lt.s32.totalorder %s260, 2
          %s262 = scalar_select %p261, %s260, 2
          %s263 = smul.u32 128, %s262
          %s265 = ssub.s32 256, %s263
          %266 = vsyncadd %s255, %s265
          %p267 = scmp.ne.s32.totalorder 0, %s263
          %s268 = smul.addr %s259, 128
          %s269 = scalar_lea.hbm %s1, %s268
          %s270 = smul.u32 8, %s262
          %s271 = sshll.u32 %s258, 4
          %s272 = int_to_ptr.vmem [resolvable:$true] %s271
          %s273 = sshll.u32 %s270, 4
          %277 = dma.hbm_to_vmem [thread:$0]  (%p267), %s269, %s273, %s272, %s255, 128, 128, 8
        $region40: #{tpu_custom_call.1} parent=31 // pred_fallthru
          _
      $region32: #{tpu_custom_call.1} parent=5 // pred_fallthru
        _
      %p278 = scmp.le.s32.totalorder 1, %s21
      %p279 = scmp.lt.s32.totalorder %s21, 3
      %p280 = pnand %p278, %p279
      %p281 = pneg %p280
      // Predicated region
      $region41: #{tpu_custom_call.1} parent=5 // pred_check
        _
      $region42: #{tpu_custom_call.1} parent=5 // pred_check_branch
        %283 = sbr.rel (%p280) target = $region44
      $region43: #{tpu_custom_call.1} parent=5 // pred_region
        %s284 = ssub.s32 %s21, 1
        %s285 = sand.u32 %s34, 1
        %s286 = scalar_lea.sflag [#allocation3], %s285
        %s287 = sand.u32 %s34, 1
        %s288 = smul.addr %s287, 16
        %s289 = scalar_lea.vmem [#allocation2], %s288
        // Predicated region
        $region45: #{tpu_custom_call.1} parent=43 // pred_check
          %p290 = pneg %p47
        $region46: #{tpu_custom_call.1} parent=43 // pred_check_branch
          %292 = sbr.rel (%p290) target = $region48
        $region47: #{tpu_custom_call.1} parent=43 // pred_region
          %293 = dma.done %s286, 256
        $region48: #{tpu_custom_call.1} parent=43 // pred_fallthru
          _
        %s294 = sand.u32 %s26, 1
        %s295 = scalar_lea.sflag [#allocation6], %s294
        %s296 = sand.u32 %s60, 1
        %s297 = smul.addr %s296, 16
        %s298 = scalar_lea.vmem [#allocation5], %s297
        // Predicated region
        $region49: #{tpu_custom_call.1} parent=43 // pred_check
          %p299 = pneg %p73
        $region50: #{tpu_custom_call.1} parent=43 // pred_check_branch
          %301 = sbr.rel (%p299) target = $region52
        $region51: #{tpu_custom_call.1} parent=43 // pred_region
          %302 = dma.done %s295, 256
        $region52: #{tpu_custom_call.1} parent=43 // pred_fallthru
          _
        // Predicated region
        $region53: #{tpu_custom_call.1} parent=43 // pred_check
          %p303 = pneg %p94
        $region54: #{tpu_custom_call.1} parent=43 // pred_check_branch
          %305 = sbr.rel (%p303) target = $region56
        $region55: #{tpu_custom_call.1} parent=43 // pred_region
          %306 = dma.done [#allocation6], 2048
        $region56: #{tpu_custom_call.1} parent=43 // pred_fallthru
          _
        %s307 = sand.u32 %s34, 1
        %s308 = scalar_lea.sflag [#allocation3], %s307
        %s309 = sand.u32 %s34, 1
        %s310 = smul.addr %s309, 16
        %s311 = scalar_lea.vmem [#allocation2], %s310
        %p312 = pneg %p47
        %p313 = pneg %p44
        %s314 = sand.u32 %s26, 1
        %s315 = scalar_lea.sflag [#allocation6], %s314
        %s316 = sand.u32 %s60, 1
        %s317 = smul.addr %s316, 16
        %s318 = scalar_lea.vmem [#allocation5], %s317
        %p319 = pneg %p73
        %p320 = pneg %p70
        %p321 = pneg %p94
        %p322 = pneg %p91
        %p323 = pneg %p115
        %p324 = pneg %p112
        %p325 = pneg %p136
        %p326 = pneg %p133
        %p327 = pneg %p157
        %p328 = pneg %p154
        %p329 = pneg %p183
        %p330 = pneg %p180
        %s331 = sand.u32 %s170, 1
        %s332 = scalar_lea.sflag [#allocation4], %s331
        %s333 = sand.u32 %s170, 1
        %s334 = smul.addr %s333, 16
        %s335 = scalar_lea.vmem [#allocation8], %s334
        %s336 = smul.u32 2, %s26
        %s337 = ssub.s32 3, %s336
        %p338 = scmp.lt.s32.totalorder %s337, 2
        %s339 = scalar_select %p338, %s337, 2
        %s340 = smul.u32 128, %s339
        %s341 = smul.u32 2, %s26
        %s342 = ssub.s32 3, %s341
        %p343 = scmp.lt.s32.totalorder %s342, 2
        %s344 = scalar_select %p343, %s342, 2
        %s345 = smul.u32 128, %s344
        %s346 = smul.u32 2, %s26
        %s347 = ssub.s32 3, %s346
        %p348 = scmp.lt.s32.totalorder %s347, 2
        %s349 = scalar_select %p348, %s347, 2
        %s350 = smul.u32 128, %s349
        %v351 = vld [vmem:[%s289] sm:$0xff]
        %v352 = vld [vmem:[%s289 + $0x8] sm:$0xff]
        %v353 = vld [vmem:[#allocation7] sm:$0xff]
        %v354 = vld [vmem:[#allocation7 + $0x8] sm:$0xff]
        %v355 = vld [vmem:[#allocation7 + $0x10] sm:$0xff]
        %v356 = vld [vmem:[#allocation7 + $0x18] sm:$0xff]
        %v357 = vld [vmem:[#allocation7 + $0x20] sm:$0xff]
        %v358 = vld [vmem:[#allocation7 + $0x28] sm:$0xff]
        %v359 = vld [vmem:[#allocation7 + $0x30] sm:$0xff]
        %v360 = vld [vmem:[#allocation7 + $0x38] sm:$0xff]
        %v361 = vld [vmem:[#allocation7 + $0x40] sm:$0xff]
        %v362 = vld [vmem:[#allocation7 + $0x48] sm:$0xff]
        %v363 = vld [vmem:[#allocation7 + $0x50] sm:$0xff]
        %v364 = vld [vmem:[#allocation7 + $0x58] sm:$0xff]
        %v365 = vld [vmem:[#allocation7 + $0x60] sm:$0xff]
        %v366 = vld [vmem:[#allocation7 + $0x68] sm:$0xff]
        %v367 = vld [vmem:[#allocation7 + $0x70] sm:$0xff]
        %v368 = vld [vmem:[#allocation7 + $0x78] sm:$0xff]
        %v369 = vld [vmem:[%s3] sm:$0x1]
        %v371 = vlaneseq
        %v372 = vshrl.u32 %v371, 7
        %v373 = vsub.s32 0, %v372
        %v374 = vrot.slane %v369, %v373
        %376 = vmatprep.subr.mxu0 0.0
        %377 = vmatpush1.msra.mxu0 %v353
        %378 = vmatprep.subr.mxu0 0.0
        %379 = vmatpush1.msra.mxu0 %v354
        %380 = vmatprep.subr.mxu0 0.0
        %381 = vmatpush1.msra.mxu0 %v355
        %382 = vmatprep.subr.mxu0 0.0
        %383 = vmatpush1.msra.mxu0 %v356
        %384 = vmatprep.subr.mxu0 0.0
        %385 = vmatpush1.msra.mxu0 %v357
        %386 = vmatprep.subr.mxu0 0.0
        %387 = vmatpush1.msra.mxu0 %v358
        %388 = vmatprep.subr.mxu0 0.0
        %389 = vmatpush1.msra.mxu0 %v359
        %390 = vmatprep.subr.mxu0 0.0
        %391 = vmatpush1.msra.mxu0 %v360
        %392 = vmatprep.subr.mxu0 0.0
        %393 = vmatpush1.msra.mxu0 %v361
        %394 = vmatprep.subr.mxu0 0.0
        %395 = vmatpush1.msra.mxu0 %v362
        %396 = vmatprep.subr.mxu0 0.0
        %397 = vmatpush1.msra.mxu0 %v363
        %398 = vmatprep.subr.mxu0 0.0
        %399 = vmatpush1.msra.mxu0 %v364
        %400 = vmatprep.subr.mxu0 0.0
        %401 = vmatpush1.msra.mxu0 %v365
        %402 = vmatprep.subr.mxu0 0.0
        %403 = vmatpush1.msra.mxu0 %v366
        %404 = vmatprep.subr.mxu0 0.0
        %405 = vmatpush1.msra.mxu0 %v367
        %406 = vmatprep.subr.mxu0 0.0
        %407 = vmatpush1.msra.mxu0 %v368
        %408 = vmatprep.subr.mxu0 0.0
        %409 = vmatpush1.msra.mxu0 0.0
        %410 = vmatprep.subr.mxu0 0.0
        %411 = vmatpush1.msra.mxu0 0.0
        %412 = vmatprep.subr.mxu0 0.0
        %413 = vmatpush1.msra.mxu0 0.0
        %414 = vmatprep.subr.mxu0 0.0
        %415 = vmatpush1.msra.mxu0 0.0
        %416 = vmatprep.subr.mxu0 0.0
        %417 = vmatpush1.msra.mxu0 0.0
        %418 = vmatprep.subr.mxu0 0.0
        %419 = vmatpush1.msra.mxu0 0.0
        %420 = vmatprep.subr.mxu0 0.0
        %421 = vmatpush1.msra.mxu0 0.0
        %422 = vmatprep.subr.mxu0 0.0
        %423 = vmatpush1.msra.mxu0 0.0
        %424 = vmatprep.subr.mxu0 0.0
        %425 = vmatpush1.msra.mxu0 0.0
        %426 = vmatprep.subr.mxu0 0.0
        %427 = vmatpush1.msra.mxu0 0.0
        %428 = vmatprep.subr.mxu0 0.0
        %429 = vmatpush1.msra.mxu0 0.0
        %430 = vmatprep.subr.mxu0 0.0
        %431 = vmatpush1.msra.mxu0 0.0
        %432 = vmatprep.subr.mxu0 0.0
        %433 = vmatpush1.msra.mxu0 0.0
        %434 = vmatprep.subr.mxu0 0.0
        %435 = vmatpush1.msra.mxu0 0.0
        %436 = vmatprep.subr.mxu0 0.0
        %437 = vmatpush1.msra.mxu0 0.0
        %438 = vmatprep.subr.mxu0 0.0
        %439 = vmatpush1.msra.mxu0 0.0
        %440 = vmatprep.mubr.f32.mxu0 0.0
        %441 = vmatmul.mubr.f32.gmra.mrb[0].mxu0 %v351
        %v442 = vpop.f32.mrb[0].mxu0
        %v443 = vadd.f32 %v374, %v442
        %v444 = vpop.f32.mrb[0].mxu0
        %445 = vmatprep.mubr.f32.mxu0 0.0
        %446 = vmatmul.mubr.f32.gmra.mrb[0].mxu0 %v352
        %v447 = vpop.f32.mrb[0].mxu0
        %v448 = vadd.f32 %v374, %v447
        %v449 = vpop.f32.mrb[0].mxu0
        %450 = vdwg.mxu0
        %v451 = vld [vmem:[%s298] sm:$0xff]
        %v452 = vld [vmem:[%s298 + $0x8] sm:$0xff]
        %v453 = vadd.f32 %v443, %v451
        %v454 = vadd.f32 %v448, %v452
        %455 = vadd.xlane.f32.xlu0 %v453
        %v456 = vpop.xlane.xlu0 %455
        %457 = vadd.xlane.f32.xlu0 %v454
        %v458 = vpop.xlane.xlu0 %457
        %v459 = vrcp.pop 128.0
        %v460 = vmul.f32 %v456, %v459
        %v461 = vmul.f32 %v458, %v459
        %v462 = vmul.f32 %v453, %v453
        %v463 = vmul.f32 %v454, %v454
        %464 = vadd.xlane.f32.xlu0 %v462
        %v465 = vpop.xlane.xlu0 %464
        %466 = vadd.xlane.f32.xlu0 %v463
        %v467 = vpop.xlane.xlu0 %466
        %v468 = vmul.f32 %v465, %v459
        %v469 = vmul.f32 %v467, %v459
        %v470 = vmul.f32 %v460, %v460
        %v471 = vmul.f32 %v461, %v461
        %v472 = vsub.f32 %v468, %v470
        %v473 = vsub.f32 %v469, %v471
        %v474 = vmax.f32 %v472, 0.0
        %v475 = vmax.f32 %v473, 0.0
        %v476 = vadd.f32 %v474, 1e-12
        %v477 = vadd.f32 %v475, 1e-12
        %v478 = vrsqrt.pop %v476
        %v479 = vrsqrt.pop %v477
        %v480 = vsub.f32 %v453, %v460
        %v481 = vsub.f32 %v454, %v461
        %v482 = vmul.f32 %v480, %v478
        %v483 = vmul.f32 %v481, %v479
        %v484 = vld [vmem:[%s4] sm:$0x1]
        %v486 = vlaneseq
        %v487 = vshrl.u32 %v486, 7
        %v488 = vsub.s32 0, %v487
        %v489 = vrot.slane %v484, %v488
        %v491 = vmul.f32 %v482, %v489
        %v492 = vmul.f32 %v483, %v489
        %v493 = vld [vmem:[%s5] sm:$0x1]
        %v495 = vlaneseq
        %v496 = vshrl.u32 %v495, 7
        %v497 = vsub.s32 0, %v496
        %v498 = vrot.slane %v493, %v497
        %v500 = vadd.f32 %v491, %v498
        %v501 = vadd.f32 %v492, %v498
        %502 = vst [vmem:[%s335] sm:$0xff] %v500
        %503 = vst [vmem:[%s335 + $0x8] sm:$0xff] %v501
        %s504 = sand.u32 %s170, 1
        %s505 = scalar_lea.sflag [#allocation4], %s504
        %s506 = sand.u32 %s170, 1
        %s507 = smul.addr %s506, 16
        %s508 = scalar_lea.vmem [#allocation8], %s507
        // Predicated region
        $region57: #{tpu_custom_call.1} parent=43 // pred_check
          %p509 = pneg %p180
        $region58: #{tpu_custom_call.1} parent=43 // pred_check_branch
          %511 = sbr.rel (%p509) target = $region60
        $region59: #{tpu_custom_call.1} parent=43 // pred_region
          %s512 = smul.u32 2, %s26
          %s513 = ssub.s32 3, %s512
          %p514 = scmp.lt.s32.totalorder %s513, 2
          %s515 = scalar_select %p514, %s513, 2
          %s516 = smul.u32 128, %s515
          %s518 = ssub.s32 256, %s516
          %519 = vsyncadd %s505, %s518
          %p520 = scmp.ne.s32.totalorder 0, %s516
          %s521 = smul.addr %s512, 128
          %s522 = scalar_lea.hbm %s6, %s521
          %s523 = smul.u32 8, %s515
          %s524 = sshll.u32 %s508, 4
          %s525 = int_to_ptr.vmem [resolvable:$true] %s524
          %s526 = sshll.u32 %s523, 4
          %530 = dma.vmem_to_hbm [thread:$0]  (%p520), %s525, %s526, %s522, %s505, 128, 128, 8
        $region60: #{tpu_custom_call.1} parent=43 // pred_fallthru
          _
      $region44: #{tpu_custom_call.1} parent=5 // pred_fallthru
        _
      %p531 = scmp.le.s32.totalorder 2, %s21
      // Predicated region
      $region61: #{tpu_custom_call.1} parent=5 // pred_check
        %p532 = pneg %p531
      $region62: #{tpu_custom_call.1} parent=5 // pred_check_branch
        %534 = sbr.rel (%p532) target = $region64
      $region63: #{tpu_custom_call.1} parent=5 // pred_region
        %s535 = ssub.s32 %s21, 2
        // Predicated region
        $region65: #{tpu_custom_call.1} parent=63 // pred_check
          %p536 = pneg %p186
        $region66: #{tpu_custom_call.1} parent=63 // pred_check_branch
          %538 = sbr.rel (%p536) target = $region68
        $region67: #{tpu_custom_call.1} parent=63 // pred_region
          %s539 = sand.u32 %s171, 1
          %s540 = scalar_lea.sflag [#allocation4], %s539
          %s541 = sand.u32 %s171, 1
          %s542 = smul.addr %s541, 16
          %s543 = scalar_lea.vmem [#allocation8], %s542
          %544 = dma.done %s540, 256
        $region68: #{tpu_custom_call.1} parent=63 // pred_fallthru
          _
      $region64: #{tpu_custom_call.1} parent=5 // pred_fallthru
        _
    $region6: #{tpu_custom_call.1} parent=1 // loop_footer
      %s25 = sadd.s32 1, %s21
    $region7: #{tpu_custom_call.1} parent=1 // loop_footer_branch
      %20 = sbr.rel target = $region3
    $region8: #{tpu_custom_call.1} parent=1 // loop_exit
      _
    %545 = vsyncpa [#allocation3], 1
    %s546 = scalar_lea.sflag [#allocation3], 1
    %547 = vsyncpa %s546, 1
    %548 = vsyncpa [#allocation6], 1
    %s549 = scalar_lea.sflag [#allocation6], 1
    %550 = vsyncpa %s549, 1
    %551 = vsyncpa [#allocation4], 1
    %s552 = scalar_lea.sflag [#allocation4], 1
    %553 = vsyncpa %s552, 1

</llo_original>
